<compile_context>
chip_gen: v5e
topology: v5e:2x2
jax: 0.10.0
libtpu: 0.0.40
codegen_flags: <defaults>
</compile_context>

<pallas_src>
import functools

import jax
import jax.numpy as jnp
from jax.experimental import pallas as pl
from jax.experimental.pallas import tpu as pltpu

LN_EPS = 1e-5  # torch.nn.LayerNorm default eps


def _attention_kernel(x_ref, g_ref, b_ref, wq_ref, wkv_ref, wo_ref, o_ref,
                      *, bt, n, dim, heads, dhp, dpad, compute_dtype, approx_recip):
    rows = bt * n

    # ---- LayerNorm (f32) over the flattened (bt*n, dim) slab ----
    x = x_ref[...].reshape(rows, dim)                                # minor dim unchanged
    mu = jnp.mean(x, axis=-1, keepdims=True)
    var = jnp.mean((x - mu) ** 2, axis=-1, keepdims=True)
    xn = (x - mu) * jax.lax.rsqrt(var + LN_EPS)
    xn = xn * g_ref[...] + b_ref[...]                                # (1, dim) broadcasts

    xn_c = xn.astype(compute_dtype)
    x_c = x.astype(compute_dtype)    # kv_input is the PRE-norm x (matches PyTorch)

    # ---- projections: pre-transposed, zero-padded, lane-dense weights ----
    # Wq has the q-scale folded in.  K and V share one fused RHS (single MXU launch).
    q = jnp.dot(xn_c, wq_ref[...], preferred_element_type=jnp.float32)   # (rows, heads*dhp)
    kv = jnp.dot(x_c, wkv_ref[...], preferred_element_type=jnp.float32)  # (rows, 2*dhp)
    k = kv[:, :dhp]                                                      # 128-aligned lane slices
    v = kv[:, dhp:]

    # ---- all heads in one batched matmul ----
    # Row-major reshape: row (b*n + i) / col (h*dhp + d)  ->  row (b, i*heads + h) / col d.
    # This preserves the 'b n (h d)' ordering exactly; every minor dim is a multiple of 128.
    q_r = q.reshape(bt, n * heads, dhp).astype(compute_dtype)
    k_r = k.reshape(bt, n, dhp).astype(compute_dtype)
    v_r = v.reshape(bt, n, dhp).astype(compute_dtype)

    sim = jnp.einsum('bqd,bkd->bqk', q_r, k_r,
                     preferred_element_type=jnp.float32)             # (bt, n*heads, n)

    # ---- softmax over keys (f32 math) ----
    sim = sim - jnp.max(sim, axis=-1, keepdims=True)
    p = jnp.exp(sim)
    denom = jnp.sum(p, axis=-1, keepdims=True)
    if approx_recip:
        attn = p * pl.reciprocal(denom, approx=True)                 # EUP slot, denom >= 1
    else:
        attn = p / denom

    out = jnp.einsum('bqk,bkd->bqd', attn.astype(compute_dtype), v_r,
                     preferred_element_type=jnp.float32)             # (bt, n*heads, dhp)
    out = out.reshape(rows, heads * dhp).astype(compute_dtype)       # inverse reshape: 'b n (h d)'

    # ---- output projection (lane-dense dpad-wide store; wrapper slices to dim) ----
    o = jnp.dot(out, wo_ref[...], preferred_element_type=jnp.float32)    # (rows, dpad)
    o_ref[...] = o.reshape(bt, n, dpad).astype(o_ref.dtype)


def _working_set_bytes(bt, n, dim, heads, dhp, dpad):
    """Rough per-grid-step live-VMEM estimate (bytes) for the kernel above."""
    rows = bt * n
    io = 2 * rows * dim * 4 + 2 * rows * dpad * 4        # double-buffered in/out blocks
    slab = rows * dim * (4 + 2 + 2)                      # x f32 + xn bf16 + x bf16
    qkv = rows * heads * dhp * (4 + 2)                   # q f32 + bf16
    qkv += rows * 2 * dhp * (4 + 2 + 2)                  # fused kv f32 + k/v bf16
    sim = rows * heads * n * (4 + 4 + 4 + 2)             # sim, p, attn f32 + attn bf16
    outb = rows * heads * dhp * (4 + 2) + rows * dpad * 4
    weights = 2 * (dim * heads * dhp + dim * 2 * dhp + heads * dhp * dpad) + 8 * dim
    return io + slab + qkv + sim + outb + weights


def _pick_batch_block(b, n, dim, heads, dhp, dpad, budget_bytes=24 * 2**20):
    """Largest divisor of b whose working set fits a conservative (v7x-safe) VMEM budget,
    while keeping >= 2 grid steps so both v7x TensorCores get work and DMA pipelines."""
    best = 1
    for bt in sorted((d for d in range(1, b + 1) if b % d == 0), reverse=True):
        if b >= 2 and b // bt < 2:
            continue
        if _working_set_bytes(bt, n, dim, heads, dhp, dpad) <= budget_bytes:
            best = bt
            break
    return best


def _prep_weights(wq, wkv, wo, *, heads, dim_head, dim, dhp, dpad, scale, compute_dtype):
    """Host-side layout plumbing: transpose to (in, out), zero-pad each head to dhp lanes,
    fuse k/v, fold the q-scale, pad the output projection to dpad lanes, cast to bf16."""
    # Wq: (heads*dim_head, dim) -> (dim, heads*dhp), head-major / dhp-minor columns.
    wq_h = (wq * scale).reshape(heads, dim_head, dim)
    wq_h = jnp.pad(wq_h, ((0, 0), (0, dhp - dim_head), (0, 0)))
    wq_t = jnp.transpose(wq_h, (2, 0, 1)).reshape(dim, heads * dhp).astype(compute_dtype)

    # Wk / Wv fused: (dim, 2*dhp); k occupies lanes [0, dhp), v occupies [dhp, 2*dhp).
    wk_t = jnp.pad(wkv[:dim_head, :].T, ((0, 0), (0, dhp - dim_head)))
    wv_t = jnp.pad(wkv[dim_head:, :].T, ((0, 0), (0, dhp - dim_head)))
    wkv_t = jnp.concatenate([wk_t, wv_t], axis=1).astype(compute_dtype)

    # Wo: (dim, heads*dim_head) -> (heads*dhp, dpad); zero rows for padded head lanes,
    # zero columns beyond dim (lane-dense output store, sliced off in the wrapper).
    wo_h = jnp.transpose(wo.reshape(dim, heads, dim_head), (1, 2, 0))   # (h, d, dim)
    wo_h = jnp.pad(wo_h, ((0, 0), (0, dhp - dim_head), (0, dpad - dim)))
    wo_t = wo_h.reshape(heads * dhp, dpad).astype(compute_dtype)
    return wq_t, wkv_t, wo_t


def attention_forward(x, gamma, beta, wq, wkv, wo, *, heads, dim_head,
                      batch_block=None, compute_dtype=jnp.bfloat16,
                      approx_reciprocal=True):
    """x: (b, n, dim) f32.  Weights follow nn.Linear convention: W of shape (out, in)."""
    b, n, dim = x.shape
    scale = dim_head ** -0.5
    dhp = -(-dim_head // 128) * 128     # per-head lane-padded width (multiple of 128)
    dpad = -(-dim // 128) * 128         # lane-dense output width

    bt = batch_block if batch_block is not None else _pick_batch_block(
        b, n, dim, heads, dhp, dpad)
    assert b % bt == 0, "batch_block must divide batch"

    ws = _working_set_bytes(bt, n, dim, heads, dhp, dpad)
    # Explicit scoped-VMEM limit (v5e default is only 16 MiB); capped below v7x's 64 MiB.
    vmem_limit = int(min(48 * 2**20, max(32 * 2**20, 2 * ws)))

    wq_t, wkv_t, wo_t = _prep_weights(
        wq, wkv, wo, heads=heads, dim_head=dim_head, dim=dim, dhp=dhp, dpad=dpad,
        scale=scale, compute_dtype=compute_dtype)

    kernel = functools.partial(
        _attention_kernel, bt=bt, n=n, dim=dim, heads=heads, dhp=dhp, dpad=dpad,
        compute_dtype=compute_dtype, approx_recip=approx_reciprocal)

    weight_mode = pl.Buffered(1)   # constant-index blocks: no pointless double-buffering

    out_padded = pl.pallas_call(
        kernel,
        out_shape=jax.ShapeDtypeStruct((b, n, dpad), x.dtype),
        grid_spec=pltpu.PrefetchScalarGridSpec(
            num_scalar_prefetch=0,
            grid=(b // bt,),
            in_specs=[
                pl.BlockSpec((bt, n, dim), lambda i: (i, 0, 0)),                # x batch tile
                pl.BlockSpec((1, dim), lambda i: (0, 0), pipeline_mode=weight_mode),   # gamma
                pl.BlockSpec((1, dim), lambda i: (0, 0), pipeline_mode=weight_mode),   # beta
                pl.BlockSpec((dim, heads * dhp), lambda i: (0, 0),
                             pipeline_mode=weight_mode),                        # Wq^T*scale (padded)
                pl.BlockSpec((dim, 2 * dhp), lambda i: (0, 0),
                             pipeline_mode=weight_mode),                        # fused Wk^T|Wv^T
                pl.BlockSpec((heads * dhp, dpad), lambda i: (0, 0),
                             pipeline_mode=weight_mode),                        # Wo^T (padded)
            ],
            out_specs=pl.BlockSpec((bt, n, dpad), lambda i: (i, 0, 0)),
        ),
        compiler_params=pltpu.CompilerParams(
            dimension_semantics=("parallel",),
            vmem_limit_bytes=vmem_limit),
    )(x, gamma.reshape(1, dim), beta.reshape(1, dim), wq_t, wkv_t, wo_t)

    return out_padded[:, :, :dim]


def attention_reference(x, gamma, beta, wq, wkv, wo, *, heads, dim_head):
    """Pure-JAX f32 reference mirroring the PyTorch forward exactly."""
    b, n, dim = x.shape
    mu = x.mean(-1, keepdims=True)
    var = ((x - mu) ** 2).mean(-1, keepdims=True)
    xn = (x - mu) / jnp.sqrt(var + LN_EPS) * gamma + beta
    q = xn @ wq.T                                   # (b, n, h*d)
    kv = x @ wkv.T                                  # kv_input is pre-norm x
    k, v = kv[..., :dim_head], kv[..., dim_head:]
    q = q.reshape(b, n, heads, dim_head).transpose(0, 2, 1, 3) * (dim_head ** -0.5)
    sim = jnp.einsum('bhid,bjd->bhij', q, k)
    attn = jax.nn.softmax(sim, axis=-1)
    out = jnp.einsum('bhij,bjd->bhid', attn, v)
    out = out.transpose(0, 2, 1, 3).reshape(b, n, heads * dim_head)
    return out @ wo.T


if __name__ == "__main__":
    # Small shapes consistent with the module: Attention(dim=32, dim_head=16, heads=4)
    B, N, DIM = 2, 8, 32
    HEADS, DIM_HEAD = 4, 16
    INNER = HEADS * DIM_HEAD

    key = jax.random.PRNGKey(0)
    kx, kq, kkv, ko, kg, kb = jax.random.split(key, 6)

    x = jax.random.normal(kx, (B, N, DIM), dtype=jnp.float32)
    wq = 0.02 * jax.random.normal(kq, (INNER, DIM), dtype=jnp.float32)           # to_q.weight
    wkv = 0.02 * jax.random.normal(kkv, (2 * DIM_HEAD, DIM), dtype=jnp.float32)  # to_kv.weight
    wo = 0.02 * jax.random.normal(ko, (DIM, INNER), dtype=jnp.float32)           # to_out.weight
    gamma = 1.0 + 0.1 * jax.random.normal(kg, (DIM,), dtype=jnp.float32)         # norm.weight
    beta = 0.1 * jax.random.normal(kb, (DIM,), dtype=jnp.float32)                # norm.bias

    out = attention_forward(x, gamma, beta, wq, wkv, wo, heads=HEADS, dim_head=DIM_HEAD)
    out = jax.block_until_ready(out)

    ref = attention_reference(x, gamma, beta, wq, wkv, wo, heads=HEADS, dim_head=DIM_HEAD)
    assert out.shape == (B, N, DIM)
    # bf16 MXU operands (f32 accumulation + f32 LN/softmax) -> bf16-appropriate tolerance.
    assert jnp.allclose(out, ref, rtol=2e-2, atol=2e-3), "Pallas kernel mismatch vs reference"

    print("KERNEL_OK")
</pallas_src>

<mosaic_0001>
module attributes {stable_mosaic.version = 11 : i64} {
  func.func @_attention_kernel(%arg0: i32, %arg1: memref<1x8x32xf32, #tpu.memory_space<vmem>>, %arg2: memref<1x32xf32, #tpu.memory_space<vmem>>, %arg3: memref<1x32xf32, #tpu.memory_space<vmem>>, %arg4: memref<32x512xbf16, #tpu.memory_space<vmem>>, %arg5: memref<32x256xbf16, #tpu.memory_space<vmem>>, %arg6: memref<512x128xbf16, #tpu.memory_space<vmem>>, %arg7: memref<1x8x128xf32, #tpu.memory_space<vmem>>) attributes {dimension_semantics = [#tpu.dimension_semantics<parallel>], iteration_bounds = array<i64: 2>, scalar_prefetch = 0 : i64, scratch_operands = 0 : i64, tpu.core_type = #tpu.core_type<tc>, window_params = [{transform_indices = @transform_0, window_bounds = array<i64: 1, 8, 32>}, {pipeline_mode = #tpu.pipeline_mode<synchronous>, transform_indices = @transform_1, window_bounds = array<i64: 1, 32>}, {pipeline_mode = #tpu.pipeline_mode<synchronous>, transform_indices = @transform_2, window_bounds = array<i64: 1, 32>}, {pipeline_mode = #tpu.pipeline_mode<synchronous>, transform_indices = @transform_3, window_bounds = array<i64: 32, 512>}, {pipeline_mode = #tpu.pipeline_mode<synchronous>, transform_indices = @transform_4, window_bounds = array<i64: 32, 256>}, {pipeline_mode = #tpu.pipeline_mode<synchronous>, transform_indices = @transform_5, window_bounds = array<i64: 512, 128>}, {transform_indices = @transform_6, window_bounds = array<i64: 1, 8, 128>}]} {
    %c0 = arith.constant 0 : index
    %c0_0 = arith.constant 0 : index
    %c0_1 = arith.constant 0 : index
    %0 = vector.load %arg1[%c0, %c0_0, %c0_1] : memref<1x8x32xf32, #tpu.memory_space<vmem>>, vector<1x8x32xf32>
    %1 = vector.shape_cast %0 : vector<1x8x32xf32> to vector<8x32xf32>
    %cst = arith.constant dense<0.000000e+00> : vector<8xf32>
    %2 = vector.multi_reduction <add>, %1, %cst [1] : vector<8x32xf32> to vector<8xf32>
    %3 = vector.shape_cast %2 : vector<8xf32> to vector<8x1xf32>
    %cst_2 = arith.constant 3.200000e+01 : f32
    %4 = vector.broadcast %cst_2 : f32 to vector<8x1xf32>
    %5 = arith.divf %3, %4 : vector<8x1xf32>
    %6 = vector.broadcast %5 : vector<8x1xf32> to vector<8x32xf32>
    %7 = arith.subf %1, %6 : vector<8x32xf32>
    %8 = arith.mulf %7, %7 : vector<8x32xf32>
    %cst_3 = arith.constant dense<0.000000e+00> : vector<8xf32>
    %9 = vector.multi_reduction <add>, %8, %cst_3 [1] : vector<8x32xf32> to vector<8xf32>
    %10 = vector.shape_cast %9 : vector<8xf32> to vector<8x1xf32>
    %cst_4 = arith.constant 3.200000e+01 : f32
    %11 = vector.broadcast %cst_4 : f32 to vector<8x1xf32>
    %12 = arith.divf %10, %11 : vector<8x1xf32>
    %13 = vector.broadcast %5 : vector<8x1xf32> to vector<8x32xf32>
    %14 = arith.subf %1, %13 : vector<8x32xf32>
    %cst_5 = arith.constant 9.99999974E-6 : f32
    %15 = vector.broadcast %cst_5 : f32 to vector<8x1xf32>
    %16 = arith.addf %12, %15 : vector<8x1xf32>
    %17 = math.rsqrt %16 : vector<8x1xf32>
    %18 = vector.broadcast %17 : vector<8x1xf32> to vector<8x32xf32>
    %19 = arith.mulf %14, %18 : vector<8x32xf32>
    %c0_6 = arith.constant 0 : index
    %c0_7 = arith.constant 0 : index
    %20 = vector.load %arg2[%c0_6, %c0_7] : memref<1x32xf32, #tpu.memory_space<vmem>>, vector<1x32xf32>
    %21 = vector.broadcast %20 : vector<1x32xf32> to vector<8x32xf32>
    %22 = arith.mulf %19, %21 : vector<8x32xf32>
    %c0_8 = arith.constant 0 : index
    %c0_9 = arith.constant 0 : index
    %23 = vector.load %arg3[%c0_8, %c0_9] : memref<1x32xf32, #tpu.memory_space<vmem>>, vector<1x32xf32>
    %24 = vector.broadcast %23 : vector<1x32xf32> to vector<8x32xf32>
    %25 = arith.addf %22, %24 : vector<8x32xf32>
    %26 = arith.truncf %25 : vector<8x32xf32> to vector<8x32xbf16>
    %27 = arith.truncf %1 : vector<8x32xf32> to vector<8x32xbf16>
    %c0_10 = arith.constant 0 : index
    %c0_11 = arith.constant 0 : index
    %28 = vector.load %arg4[%c0_10, %c0_11] : memref<32x512xbf16, #tpu.memory_space<vmem>>, vector<32x512xbf16>
    %cst_12 = arith.constant dense<0.000000e+00> : vector<8x512xf32>
    %29 = tpu.matmul %26, %28, %cst_12 {dimension_numbers = #tpu.dot_dimension_numbers<[1], [0], [0], [1], [0, 0, 1, 1], [], []>} : vector<8x32xbf16>, vector<32x512xbf16>, vector<8x512xf32> -> vector<8x512xf32>
    %c0_13 = arith.constant 0 : index
    %c0_14 = arith.constant 0 : index
    %30 = vector.load %arg5[%c0_13, %c0_14] : memref<32x256xbf16, #tpu.memory_space<vmem>>, vector<32x256xbf16>
    %cst_15 = arith.constant dense<0.000000e+00> : vector<8x256xf32>
    %31 = tpu.matmul %27, %30, %cst_15 {dimension_numbers = #tpu.dot_dimension_numbers<[1], [0], [0], [1], [0, 0, 1, 1], [], []>} : vector<8x32xbf16>, vector<32x256xbf16>, vector<8x256xf32> -> vector<8x256xf32>
    %32 = vector.extract_strided_slice %31 {offsets = [0, 0], sizes = [8, 128], strides = [1, 1]} : vector<8x256xf32> to vector<8x128xf32>
    %33 = vector.extract_strided_slice %31 {offsets = [0, 128], sizes = [8, 128], strides = [1, 1]} : vector<8x256xf32> to vector<8x128xf32>
    %34 = vector.shape_cast %29 : vector<8x512xf32> to vector<1x32x128xf32>
    %35 = arith.truncf %34 : vector<1x32x128xf32> to vector<1x32x128xbf16>
    %36 = vector.shape_cast %32 : vector<8x128xf32> to vector<1x8x128xf32>
    %37 = arith.truncf %36 : vector<1x8x128xf32> to vector<1x8x128xbf16>
    %38 = vector.shape_cast %33 : vector<8x128xf32> to vector<1x8x128xf32>
    %39 = arith.truncf %38 : vector<1x8x128xf32> to vector<1x8x128xbf16>
    "tpu.trace_start"() <{level = 10 : i32, message = "bqd,bkd->bqk"}> : () -> ()
    %cst_16 = arith.constant dense<0.000000e+00> : vector<1x32x8xf32>
    %40 = tpu.matmul %35, %37, %cst_16 {dimension_numbers = #tpu.dot_dimension_numbers<[2], [2], [1], [1], [0, 0, 0, 1, 1, 1], [0], [0]>} : vector<1x32x128xbf16>, vector<1x8x128xbf16>, vector<1x32x8xf32> -> vector<1x32x8xf32>
    "tpu.trace_stop"() : () -> ()
    %cst_17 = arith.constant dense<0xFF800000> : vector<1x32xf32>
    %41 = vector.multi_reduction <maximumf>, %40, %cst_17 [2] : vector<1x32x8xf32> to vector<1x32xf32>
    %42 = vector.shape_cast %41 : vector<1x32xf32> to vector<1x32x1xf32>
    %43 = vector.broadcast %42 : vector<1x32x1xf32> to vector<1x32x8xf32>
    %44 = arith.subf %40, %43 : vector<1x32x8xf32>
    %45 = math.exp %44 : vector<1x32x8xf32>
    %cst_18 = arith.constant dense<0.000000e+00> : vector<1x32xf32>
    %46 = vector.multi_reduction <add>, %45, %cst_18 [2] : vector<1x32x8xf32> to vector<1x32xf32>
    %47 = vector.shape_cast %46 : vector<1x32xf32> to vector<1x32x1xf32>
    %48 = tpu.reciprocal %47 {approx = true} : vector<1x32x1xf32> -> vector<1x32x1xf32>
    %49 = vector.broadcast %48 : vector<1x32x1xf32> to vector<1x32x8xf32>
    %50 = arith.mulf %45, %49 : vector<1x32x8xf32>
    %51 = arith.truncf %50 : vector<1x32x8xf32> to vector<1x32x8xbf16>
    "tpu.trace_start"() <{level = 10 : i32, message = "bqk,bkd->bqd"}> : () -> ()
    %cst_19 = arith.constant dense<0.000000e+00> : vector<1x32x128xf32>
    %52 = tpu.matmul %51, %39, %cst_19 {dimension_numbers = #tpu.dot_dimension_numbers<[2], [1], [1], [2], [0, 0, 0, 1, 1, 2], [0], [0]>} : vector<1x32x8xbf16>, vector<1x8x128xbf16>, vector<1x32x128xf32> -> vector<1x32x128xf32>
    "tpu.trace_stop"() : () -> ()
    %53 = vector.shape_cast %52 : vector<1x32x128xf32> to vector<8x512xf32>
    %54 = arith.truncf %53 : vector<8x512xf32> to vector<8x512xbf16>
    %c0_20 = arith.constant 0 : index
    %c0_21 = arith.constant 0 : index
    %55 = vector.load %arg6[%c0_20, %c0_21] : memref<512x128xbf16, #tpu.memory_space<vmem>>, vector<512x128xbf16>
    %cst_22 = arith.constant dense<0.000000e+00> : vector<8x128xf32>
    %56 = tpu.matmul %54, %55, %cst_22 {dimension_numbers = #tpu.dot_dimension_numbers<[1], [0], [0], [1], [0, 0, 1, 1], [], []>} : vector<8x512xbf16>, vector<512x128xbf16>, vector<8x128xf32> -> vector<8x128xf32>
    %57 = vector.shape_cast %56 : vector<8x128xf32> to vector<1x8x128xf32>
    %c0_23 = arith.constant 0 : index
    %c0_24 = arith.constant 0 : index
    %c0_25 = arith.constant 0 : index
    %58 = vector.load %arg7[%c0_23, %c0_24, %c0_25] : memref<1x8x128xf32, #tpu.memory_space<vmem>>, vector<1x8x128xf32>
    tpu.vector_store %arg7[%c0_23, %c0_24, %c0_25], %57 {strides = array<i32>} : memref<1x8x128xf32, #tpu.memory_space<vmem>>, vector<1x8x128xf32>,
    return
  }
  func.func @transform_0(%arg0: i32) -> (i32, i32, i32) {
    %c0_i32 = arith.constant 0 : i32
    %c0_i32_0 = arith.constant 0 : i32
    %c0_i32_1 = arith.constant 0 : i32
    return %arg0, %c0_i32, %c0_i32_0 : i32, i32, i32
  }
  func.func @transform_1(%arg0: i32) -> (i32, i32) {
    %c0_i32 = arith.constant 0 : i32
    %c0_i32_0 = arith.constant 0 : i32
    %c0_i32_1 = arith.constant 0 : i32
    return %c0_i32, %c0_i32_0 : i32, i32
  }
  func.func @transform_2(%arg0: i32) -> (i32, i32) {
    %c0_i32 = arith.constant 0 : i32
    %c0_i32_0 = arith.constant 0 : i32
    %c0_i32_1 = arith.constant 0 : i32
    return %c0_i32, %c0_i32_0 : i32, i32
  }
  func.func @transform_3(%arg0: i32) -> (i32, i32) {
    %c0_i32 = arith.constant 0 : i32
    %c0_i32_0 = arith.constant 0 : i32
    %c0_i32_1 = arith.constant 0 : i32
    return %c0_i32, %c0_i32_0 : i32, i32
  }
  func.func @transform_4(%arg0: i32) -> (i32, i32) {
    %c0_i32 = arith.constant 0 : i32
    %c0_i32_0 = arith.constant 0 : i32
    %c0_i32_1 = arith.constant 0 : i32
    return %c0_i32, %c0_i32_0 : i32, i32
  }
  func.func @transform_5(%arg0: i32) -> (i32, i32) {
    %c0_i32 = arith.constant 0 : i32
    %c0_i32_0 = arith.constant 0 : i32
    %c0_i32_1 = arith.constant 0 : i32
    return %c0_i32, %c0_i32_0 : i32, i32
  }
  func.func @transform_6(%arg0: i32) -> (i32, i32, i32) {
    %c0_i32 = arith.constant 0 : i32
    %c0_i32_0 = arith.constant 0 : i32
    %c0_i32_1 = arith.constant 0 : i32
    return %arg0, %c0_i32, %c0_i32_0 : i32, i32, i32
  }
}

</mosaic_0001>

<llo_original>
// kernel: tpu_custom_call.1
$region0: #{tpu_custom_call.1}
  #allocation0 [shape = 'u32[]', space=smem, size = 0x4, offset = 0x4, fixed_abs, tag = 'smem constant byte address 0x4 - core index']
  #allocation1 [shape = 'u32[72,128]{1,0:T(1,128)}', space=vmem, size = 0x9000, scoped, tag = 'internal scratch']
  %s0 = inlined_call_operand.hbm [shape: f32[2,8,32], index: 0, kind: input, shape index: {}]
  %s1 = inlined_call_operand.hbm [shape: f32[1,32], index: 1, kind: input, shape index: {}]
  %s2 = inlined_call_operand.vmem [shape: f32[1,32], index: 2, kind: input, shape index: {}]
  %s3 = inlined_call_operand.hbm [shape: bf16[32,512], index: 3, kind: input, shape index: {}]
  %s4 = inlined_call_operand.hbm [shape: bf16[32,256], index: 4, kind: input, shape index: {}]
  %s5 = inlined_call_operand.hbm [shape: bf16[512,128], index: 5, kind: input, shape index: {}]
  %s6 = inlined_call_operand.hbm [shape: f32[2,8,128], index: 6, kind: output, shape index: {}]
  %s7 = sld [smem:[#allocation0]]
  $region77: #{tpu_custom_call.1} parent=0
    _
  %s9 = ssub.s32 1, %s7
  %s10 = scalar_select 0, %s9, %s7
  $region1: #{tpu_custom_call.1} parent=0
    #allocation2 [shape = 'u8[8192]{0}', space=vmem, size = 0x2000, scoped, tag = 'input window, operand 0']
    #allocation3 [shape = 's32[2]{0}', space=sflag, size = 0x8, scoped, tag = 'scoped memory for tpu_custom_call.1']
    #allocation4 [shape = 's32[2]{0}', space=sflag, size = 0x8, scoped, tag = 'scoped memory for tpu_custom_call.1']
    #allocation5 [shape = 'u8[512]{0}', space=vmem, size = 0x400, scoped, tag = 'input window, operand 1, single buffered']
    #allocation6 [shape = 's32[1]{0}', space=sflag, size = 0x4, scoped, tag = 'scoped memory for tpu_custom_call.1']
    #allocation7 [shape = 'u8[32768]{0}', space=vmem, size = 0x8000, scoped, tag = 'input window, operand 3, single buffered']
    #allocation8 [shape = 'u8[16384]{0}', space=vmem, size = 0x4000, scoped, tag = 'input window, operand 4, single buffered']
    #allocation9 [shape = 's32[1]{0}', space=sflag, size = 0x4, scoped, tag = 'scoped memory for tpu_custom_call.1']
    #allocation10 [shape = 'u8[131072]{0}', space=vmem, size = 0x20000, scoped, tag = 'input window, operand 5, single buffered']
    #allocation11 [shape = 'u8[8192]{0}', space=vmem, size = 0x2000, scoped, tag = 'output window, operand 0']
    %11 = vsyncpa [#allocation3], 0
    %s12 = scalar_lea.sflag [#allocation3], 1
    %13 = vsyncpa %s12, 0
    %14 = vsyncpa [#allocation6], 0
    %15 = vsyncpa [#allocation9], 0
    %16 = vsyncpa [#allocation4], 0
    %s17 = scalar_lea.sflag [#allocation4], 1
    %18 = vsyncpa %s17, 0
    loop: start=0, step=1, limit=4
    $region2: #{tpu_custom_call.1} parent=1 // loop_pre_header
      _
    $region3: #{tpu_custom_call.1} parent=1 // loop_header
      %s20 = sphi 0, %s24
      %p21 = scmp.ge.s32.totalorder %s20, 4
      %s30 = sphi 0, %s32
      %s33 = sphi 0, %s30
      %s34 = sphi 0, %s33
      %s50 = sphi 0, %s34
      %s54 = sphi 0, %s54
      %s56 = sphi 0, %s54
      %s57 = sphi 0, %s56
      %s71 = sphi 0, %s57
      %s75 = sphi 0, %s75
      %s77 = sphi 0, %s75
      %s78 = sphi 0, %s77
      %s92 = sphi 0, %s78
      %s96 = sphi 0, %s96
      %s98 = sphi 0, %s96
      %s99 = sphi 0, %s98
      %s113 = sphi 0, %s99
      %s117 = sphi 0, %s117
      %s119 = sphi 0, %s117
      %s120 = sphi 0, %s119
      %s134 = sphi 0, %s120
      %s138 = sphi 0, %s138
      %s140 = sphi 0, %s138
      %s141 = sphi 0, %s140
      %s155 = sphi 0, %s141
      %s161 = sphi 0, %s163
      %s164 = sphi 0, %s161
      %s165 = sphi 0, %s164
      %s181 = sphi 0, %s165
    $region4: #{tpu_custom_call.1} parent=1 // loop_header_branch
      %23 = sbr.rel (%p21) target = $region8
    $region5: #{tpu_custom_call.1} parent=1 // loop_body
      %s25 = ssub.s32 %s20, 1
      %s26 = ssub.s32 %s20, 2
      %s27 = sadd.s32 %s20, 1
      %s28 = ssub.s32 %s20, %s27
      %p29 = scmp.eq.s32.totalorder %s28, 0
      %s31 = sadd.s32 %s30, 1
      %s32 = scalar_select %p29, %s30, %s31
      %p35 = pneg %p29
      %p36 = scmp.eq.s32.totalorder %s20, 1
      %p37 = por %p35, %p36
      %p38 = scmp.ne.s32.totalorder %s30, %s33
      %p39 = scmp.eq.s32.totalorder %s20, 0
      %p40 = por %p38, %p39
      %p41 = scmp.ne.s32.totalorder %s30, %s33
      %p42 = scmp.eq.s32.totalorder %s25, 1
      %p43 = por %p41, %p42
      %p44 = scmp.ne.s32.totalorder %s33, %s34
      %p45 = scmp.eq.s32.totalorder %s25, 0
      %p46 = por %p44, %p45
      %p47 = scmp.ne.s32.totalorder %s33, %s34
      %p48 = scmp.eq.s32.totalorder %s26, 1
      %p49 = por %p47, %p48
      %p51 = scmp.ne.s32.totalorder %s34, %s50
      %p52 = scmp.eq.s32.totalorder %s26, 0
      %p53 = por %p51, %p52
      %s55 = sadd.s32 %s54, 1
      %p58 = scmp.eq.s32.totalorder %s20, 1
      %p59 = scmp.ne.s32.totalorder %s54, %s56
      %p60 = scmp.eq.s32.totalorder %s20, 0
      %p61 = por %p59, %p60
      %p62 = scmp.ne.s32.totalorder %s54, %s56
      %p63 = scmp.eq.s32.totalorder %s25, 1
      %p64 = por %p62, %p63
      %p65 = scmp.ne.s32.totalorder %s56, %s57
      %p66 = scmp.eq.s32.totalorder %s25, 0
      %p67 = por %p65, %p66
      %p68 = scmp.ne.s32.totalorder %s56, %s57
      %p69 = scmp.eq.s32.totalorder %s26, 1
      %p70 = por %p68, %p69
      %p72 = scmp.ne.s32.totalorder %s57, %s71
      %p73 = scmp.eq.s32.totalorder %s26, 0
      %p74 = por %p72, %p73
      %s76 = sadd.s32 %s75, 1
      %p79 = scmp.eq.s32.totalorder %s20, 1
      %p80 = scmp.ne.s32.totalorder %s75, %s77
      %p81 = scmp.eq.s32.totalorder %s20, 0
      %p82 = por %p80, %p81
      %p83 = scmp.ne.s32.totalorder %s75, %s77
      %p84 = scmp.eq.s32.totalorder %s25, 1
      %p85 = por %p83, %p84
      %p86 = scmp.ne.s32.totalorder %s77, %s78
      %p87 = scmp.eq.s32.totalorder %s25, 0
      %p88 = por %p86, %p87
      %p89 = scmp.ne.s32.totalorder %s77, %s78
      %p90 = scmp.eq.s32.totalorder %s26, 1
      %p91 = por %p89, %p90
      %p93 = scmp.ne.s32.totalorder %s78, %s92
      %p94 = scmp.eq.s32.totalorder %s26, 0
      %p95 = por %p93, %p94
      %s97 = sadd.s32 %s96, 1
      %p100 = scmp.eq.s32.totalorder %s20, 1
      %p101 = scmp.ne.s32.totalorder %s96, %s98
      %p102 = scmp.eq.s32.totalorder %s20, 0
      %p103 = por %p101, %p102
      %p104 = scmp.ne.s32.totalorder %s96, %s98
      %p105 = scmp.eq.s32.totalorder %s25, 1
      %p106 = por %p104, %p105
      %p107 = scmp.ne.s32.totalorder %s98, %s99
      %p108 = scmp.eq.s32.totalorder %s25, 0
      %p109 = por %p107, %p108
      %p110 = scmp.ne.s32.totalorder %s98, %s99
      %p111 = scmp.eq.s32.totalorder %s26, 1
      %p112 = por %p110, %p111
      %p114 = scmp.ne.s32.totalorder %s99, %s113
      %p115 = scmp.eq.s32.totalorder %s26, 0
      %p116 = por %p114, %p115
      %s118 = sadd.s32 %s117, 1
      %p121 = scmp.eq.s32.totalorder %s20, 1
      %p122 = scmp.ne.s32.totalorder %s117, %s119
      %p123 = scmp.eq.s32.totalorder %s20, 0
      %p124 = por %p122, %p123
      %p125 = scmp.ne.s32.totalorder %s117, %s119
      %p126 = scmp.eq.s32.totalorder %s25, 1
      %p127 = por %p125, %p126
      %p128 = scmp.ne.s32.totalorder %s119, %s120
      %p129 = scmp.eq.s32.totalorder %s25, 0
      %p130 = por %p128, %p129
      %p131 = scmp.ne.s32.totalorder %s119, %s120
      %p132 = scmp.eq.s32.totalorder %s26, 1
      %p133 = por %p131, %p132
      %p135 = scmp.ne.s32.totalorder %s120, %s134
      %p136 = scmp.eq.s32.totalorder %s26, 0
      %p137 = por %p135, %p136
      %s139 = sadd.s32 %s138, 1
      %p142 = scmp.eq.s32.totalorder %s20, 1
      %p143 = scmp.ne.s32.totalorder %s138, %s140
      %p144 = scmp.eq.s32.totalorder %s20, 0
      %p145 = por %p143, %p144
      %p146 = scmp.ne.s32.totalorder %s138, %s140
      %p147 = scmp.eq.s32.totalorder %s25, 1
      %p148 = por %p146, %p147
      %p149 = scmp.ne.s32.totalorder %s140, %s141
      %p150 = scmp.eq.s32.totalorder %s25, 0
      %p151 = por %p149, %p150
      %p152 = scmp.ne.s32.totalorder %s140, %s141
      %p153 = scmp.eq.s32.totalorder %s26, 1
      %p154 = por %p152, %p153
      %p156 = scmp.ne.s32.totalorder %s141, %s155
      %p157 = scmp.eq.s32.totalorder %s26, 0
      %p158 = por %p156, %p157
      %s159 = ssub.s32 %s20, %s27
      %p160 = scmp.eq.s32.totalorder %s159, 0
      %s162 = sadd.s32 %s161, 1
      %s163 = scalar_select %p160, %s161, %s162
      %p166 = pneg %p160
      %p167 = scmp.eq.s32.totalorder %s20, 1
      %p168 = por %p166, %p167
      %p169 = scmp.ne.s32.totalorder %s161, %s164
      %p170 = scmp.eq.s32.totalorder %s20, 0
      %p171 = por %p169, %p170
      %p172 = scmp.ne.s32.totalorder %s161, %s164
      %p173 = scmp.eq.s32.totalorder %s25, 1
      %p174 = por %p172, %p173
      %p175 = scmp.ne.s32.totalorder %s164, %s165
      %p176 = scmp.eq.s32.totalorder %s25, 0
      %p177 = por %p175, %p176
      %p178 = scmp.ne.s32.totalorder %s164, %s165
      %p179 = scmp.eq.s32.totalorder %s26, 1
      %p180 = por %p178, %p179
      %p182 = scmp.ne.s32.totalorder %s165, %s181
      %p183 = scmp.eq.s32.totalorder %s26, 0
      %p184 = por %p182, %p183
      %p185 = scmp.le.s32.totalorder 1, %s20
      %p186 = scmp.lt.s32.totalorder %s20, 3
      %p187 = pnand %p185, %p186
      %p188 = pneg %p187
      // Predicated region
      $region9: #{tpu_custom_call.1} parent=5 // pred_check
        _
      $region10: #{tpu_custom_call.1} parent=5 // pred_check_branch
        %190 = sbr.rel (%p187) target = $region12
      $region11: #{tpu_custom_call.1} parent=5 // pred_region
        %s191 = ssub.s32 %s20, 1
        // Predicated region
        $region13: #{tpu_custom_call.1} parent=11 // pred_check
          %p192 = pneg %p67
        $region14: #{tpu_custom_call.1} parent=11 // pred_check_branch
          %194 = sbr.rel (%p192) target = $region16
        $region15: #{tpu_custom_call.1} parent=11 // pred_region
          %196 = vsyncadd [#allocation6], 0
          %s198 = sshll.u32 %s1, 4
          %s199 = int_to_ptr.hbm [resolvable:$true] %s198
          %s200 = sshll.u32 [#allocation5], 4
          %s201 = int_to_ptr.vmem [resolvable:$true] %s200
          %203 = dma.hbm_to_vmem [thread:$0]  %s199, 16, %s201, [#allocation6]
        $region16: #{tpu_custom_call.1} parent=11 // pred_fallthru
          _
        // Predicated region
        $region17: #{tpu_custom_call.1} parent=11 // pred_check
          %p204 = pneg %p88
        $region18: #{tpu_custom_call.1} parent=11 // pred_check_branch
          %206 = sbr.rel (%p204) target = $region20
        $region19: #{tpu_custom_call.1} parent=11 // pred_region
          _
        $region20: #{tpu_custom_call.1} parent=11 // pred_fallthru
          _
        // Predicated region
        $region21: #{tpu_custom_call.1} parent=11 // pred_check
          %p207 = pneg %p109
        $region22: #{tpu_custom_call.1} parent=11 // pred_check_branch
          %209 = sbr.rel (%p207) target = $region24
        $region23: #{tpu_custom_call.1} parent=11 // pred_region
          %211 = vsyncadd [#allocation6], 0
          %s212 = sshll.u32 %s3, 4
          %s213 = int_to_ptr.hbm [resolvable:$true] %s212
          %s214 = sshll.u32 [#allocation7], 4
          %s215 = int_to_ptr.vmem [resolvable:$true] %s214
          %220 = dma.hbm_to_vmem [thread:$0]  %s213, 1024, %s215, [#allocation6], 256, 256, 16
        $region24: #{tpu_custom_call.1} parent=11 // pred_fallthru
          _
        // Predicated region
        $region25: #{tpu_custom_call.1} parent=11 // pred_check
          %p221 = pneg %p130
        $region26: #{tpu_custom_call.1} parent=11 // pred_check_branch
          %223 = sbr.rel (%p221) target = $region28
        $region27: #{tpu_custom_call.1} parent=11 // pred_region
          %225 = vsyncadd [#allocation9], 0
          %s226 = sshll.u32 %s4, 4
          %s227 = int_to_ptr.hbm [resolvable:$true] %s226
          %s228 = sshll.u32 [#allocation8], 4
          %s229 = int_to_ptr.vmem [resolvable:$true] %s228
          %234 = dma.hbm_to_vmem [thread:$0]  %s227, 512, %s229, [#allocation9], 128, 128, 8
        $region28: #{tpu_custom_call.1} parent=11 // pred_fallthru
          _
        // Predicated region
        $region29: #{tpu_custom_call.1} parent=11 // pred_check
          %p235 = pneg %p151
        $region30: #{tpu_custom_call.1} parent=11 // pred_check_branch
          %237 = sbr.rel (%p235) target = $region32
        $region31: #{tpu_custom_call.1} parent=11 // pred_region
          %239 = vsyncadd [#allocation9], 0
          %s240 = sshll.u32 %s5, 4
          %s241 = int_to_ptr.hbm [resolvable:$true] %s240
          %s242 = sshll.u32 [#allocation10], 4
          %s243 = int_to_ptr.vmem [resolvable:$true] %s242
          %248 = dma.hbm_to_vmem [thread:$0]  %s241, 4096, %s243, [#allocation9], 64, 64, 4
        $region32: #{tpu_custom_call.1} parent=11 // pred_fallthru
          _
      $region12: #{tpu_custom_call.1} parent=5 // pred_fallthru
        _
      %p249 = scmp.lt.s32.totalorder %s20, 2
      // Predicated region
      $region33: #{tpu_custom_call.1} parent=5 // pred_check
        %p250 = pneg %p249
      $region34: #{tpu_custom_call.1} parent=5 // pred_check_branch
        %252 = sbr.rel (%p250) target = $region36
      $region35: #{tpu_custom_call.1} parent=5 // pred_region
        // Predicated region
        $region37: #{tpu_custom_call.1} parent=35 // pred_check
          %p253 = pneg %p40
        $region38: #{tpu_custom_call.1} parent=35 // pred_check_branch
          %255 = sbr.rel (%p253) target = $region40
        $region39: #{tpu_custom_call.1} parent=35 // pred_region
          %s256 = sand.u32 %s30, 1
          %s257 = scalar_lea.sflag [#allocation3], %s256
          %s258 = sand.u32 %s30, 1
          %s259 = smul.addr %s258, 8
          %s260 = scalar_lea.vmem [#allocation2], %s259
          %262 = vsyncadd %s257, 0
          %s263 = smul.addr %s20, 8
          %s264 = scalar_lea.hbm %s0, %s263
          %s266 = sshll.u32 %s264, 4
          %s267 = int_to_ptr.hbm [resolvable:$true] %s266
          %s268 = sshll.u32 %s260, 4
          %s269 = int_to_ptr.vmem [resolvable:$true] %s268
          %271 = dma.hbm_to_vmem [thread:$0]  %s267, 128, %s269, %s257
        $region40: #{tpu_custom_call.1} parent=35 // pred_fallthru
          _
      $region36: #{tpu_custom_call.1} parent=5 // pred_fallthru
        _
      %p272 = scmp.le.s32.totalorder 1, %s20
      %p273 = scmp.lt.s32.totalorder %s20, 3
      %p274 = pnand %p272, %p273
      %p275 = pneg %p274
      // Predicated region
      $region41: #{tpu_custom_call.1} parent=5 // pred_check
        _
      $region42: #{tpu_custom_call.1} parent=5 // pred_check_branch
        %277 = sbr.rel (%p274) target = $region44
      $region43: #{tpu_custom_call.1} parent=5 // pred_region
        %s278 = ssub.s32 %s20, 1
        %s279 = sand.u32 %s33, 1
        %s280 = scalar_lea.sflag [#allocation3], %s279
        %s281 = sand.u32 %s33, 1
        %s282 = smul.addr %s281, 8
        %s283 = scalar_lea.vmem [#allocation2], %s282
        // Predicated region
        $region45: #{tpu_custom_call.1} parent=43 // pred_check
          %p284 = pneg %p46
        $region46: #{tpu_custom_call.1} parent=43 // pred_check_branch
          %286 = sbr.rel (%p284) target = $region48
        $region47: #{tpu_custom_call.1} parent=43 // pred_region
          %288 = dma.done %s280, 128
        $region48: #{tpu_custom_call.1} parent=43 // pred_fallthru
          _
        // Predicated region
        $region49: #{tpu_custom_call.1} parent=43 // pred_check
          %p289 = pneg %p67
        $region50: #{tpu_custom_call.1} parent=43 // pred_check_branch
          %291 = sbr.rel (%p289) target = $region52
        $region51: #{tpu_custom_call.1} parent=43 // pred_region
          %293 = dma.done [#allocation6], 16
        $region52: #{tpu_custom_call.1} parent=43 // pred_fallthru
          _
        // Predicated region
        $region53: #{tpu_custom_call.1} parent=43 // pred_check
          %p294 = pneg %p109
        $region54: #{tpu_custom_call.1} parent=43 // pred_check_branch
          %296 = sbr.rel (%p294) target = $region56
        $region55: #{tpu_custom_call.1} parent=43 // pred_region
          %298 = dma.done [#allocation6], 1024
        $region56: #{tpu_custom_call.1} parent=43 // pred_fallthru
          _
        // Predicated region
        $region57: #{tpu_custom_call.1} parent=43 // pred_check
          %p299 = pneg %p130
        $region58: #{tpu_custom_call.1} parent=43 // pred_check_branch
          %301 = sbr.rel (%p299) target = $region60
        $region59: #{tpu_custom_call.1} parent=43 // pred_region
          %303 = dma.done [#allocation9], 512
        $region60: #{tpu_custom_call.1} parent=43 // pred_fallthru
          _
        // Predicated region
        $region61: #{tpu_custom_call.1} parent=43 // pred_check
          %p304 = pneg %p151
        $region62: #{tpu_custom_call.1} parent=43 // pred_check_branch
          %306 = sbr.rel (%p304) target = $region64
        $region63: #{tpu_custom_call.1} parent=43 // pred_region
          %308 = dma.done [#allocation9], 4096
        $region64: #{tpu_custom_call.1} parent=43 // pred_fallthru
          _
        %s309 = sand.u32 %s33, 1
        %s310 = scalar_lea.sflag [#allocation3], %s309
        %s311 = sand.u32 %s33, 1
        %s312 = smul.addr %s311, 8
        %s313 = scalar_lea.vmem [#allocation2], %s312
        %p314 = pneg %p46
        %p315 = pneg %p43
        %p316 = pneg %p67
        %p317 = pneg %p64
        %p318 = pneg %p88
        %p319 = pneg %p85
        %p320 = pneg %p109
        %p321 = pneg %p106
        %p322 = pneg %p130
        %p323 = pneg %p127
        %p324 = pneg %p151
        %p325 = pneg %p148
        %p326 = pneg %p177
        %p327 = pneg %p174
        %s328 = sand.u32 %s164, 1
        %s329 = scalar_lea.sflag [#allocation4], %s328
        %s330 = sand.u32 %s164, 1
        %s331 = smul.addr %s330, 8
        %s332 = scalar_lea.vmem [#allocation11], %s331
        %v334 = vld [vmem:[%s283] sm:$0xff]
        %vm335 = vcmask 261120
        %v336 = vsel %vm335, %v334, 0.0
        %337 = vadd.xlane.f32.xlu0 %v336
        %v338 = vpop.xlane.xlu0 %337
        %v339 = vrcp.pop 32.0
        %v340 = vmul.f32 32.0, %v339
        %v341 = vsub.f32 1.0, %v340
        %v342 = vmul.f32 %v339, %v341
        %v343 = vadd.f32 %v339, %v342
        %vm344 = vweird.f32 %v339
        %v345 = vsel %vm344, %v339, %v343
        %v346 = vmul.f32 %v338, %v345
        %v347 = vsub.f32 %v334, %v346
        %v348 = vmul.f32 %v347, %v347
        %v349 = vsel %vm335, %v348, 0.0
        %350 = vadd.xlane.f32.xlu0 %v349
        %v351 = vpop.xlane.xlu0 %350
        %v352 = vmul.f32 %v351, %v345
        %v353 = vadd.f32 %v352, 1e-05
        %v354 = vrsqrt.pop %v353
        %v355 = vmul.f32 %v354, %v353
        %v356 = vmul.f32 %v355, %v354
        %v357 = vmul.f32 0.5, %v356
        %v358 = vsub.f32 1.5, %v357
        %v359 = vmul.f32 %v354, %v358
        %vm360 = vweird.f32 %v353
        %vm361 = vweird.f32 %v354
        %vm362 = vmor %vm360, %vm361
        %v363 = vsel %vm362, %v354, %v359
        %v364 = vmul.f32 %v347, %v363
        %v365 = vld [vmem:[#allocation5] sm:$0x1]
        %v367 = vperm.slane %v365, 0
        %v369 = vmul.f32 %v364, %v367
        %v370 = vld [vmem:[%s2] sm:$0x1]
        %v372 = vperm.slane %v370, 0
        %v374 = vadd.f32 %v369, %v372
        %v375 = vpack.c.bf16 %v374, %v374
        %v376 = vpack.c.bf16 %v334, %v334
        %v377 = vld [vmem:[#allocation7] sm:$0xff]
        %v378 = vld [vmem:[#allocation7 + $0x8] sm:$0xff]
        %v379 = vld [vmem:[#allocation7 + $0x10] sm:$0xff]
        %v380 = vld [vmem:[#allocation7 + $0x18] sm:$0xff]
        %v381 = vld [vmem:[#allocation7 + $0x20] sm:$0xff]
        %v382 = vld [vmem:[#allocation7 + $0x28] sm:$0xff]
        %v383 = vld [vmem:[#allocation7 + $0x30] sm:$0xff]
        %v384 = vld [vmem:[#allocation7 + $0x38] sm:$0xff]
        %v393 = vunpack.c.l.b16 %v377
        %v394 = vunpack.c.h.b16 %v377
        %v395 = vunpack.c.l.b16 %v378
        %v396 = vunpack.c.h.b16 %v378
        %v397 = vunpack.c.l.b16 %v379
        %v398 = vunpack.c.h.b16 %v379
        %v399 = vunpack.c.l.b16 %v380
        %v400 = vunpack.c.h.b16 %v380
        %v401 = vunpack.c.l.b16 %v381
        %v402 = vunpack.c.h.b16 %v381
        %v403 = vunpack.c.l.b16 %v382
        %v404 = vunpack.c.h.b16 %v382
        %v405 = vunpack.c.l.b16 %v383
        %v406 = vunpack.c.h.b16 %v383
        %v407 = vunpack.c.l.b16 %v384
        %v408 = vunpack.c.h.b16 %v384
        %v409 = vpack.c.b16 %v397, %v393
        %v410 = vpack.c.b16 %v398, %v394
        %v411 = vpack.c.b16 %v399, %v395
        %v412 = vpack.c.b16 %v400, %v396
        %v413 = vpack.c.b16 %v405, %v401
        %v414 = vpack.c.b16 %v406, %v402
        %v415 = vpack.c.b16 %v407, %v403
        %v416 = vpack.c.b16 %v408, %v404
        %v426 = vsel %vm335, %v375, 0
        %428 = vmatpush.bf16.msra.mxu0 0
        %429 = vmatpush.bf16.msra.mxu0 0
        %430 = vmatpush.bf16.msra.mxu0 0
        %431 = vmatpush.bf16.msra.mxu0 0
        %432 = vmatpush.bf16.msra.mxu0 0
        %433 = vmatpush.bf16.msra.mxu0 0
        %434 = vmatpush.bf16.msra.mxu0 %v413
        %435 = vmatpush.bf16.msra.mxu0 %v409
        %436 = vmatmul.bf16.gmra.mxu0 %v426
        %v437 = vpop.f32.mrf.mxu0
        %v438 = vadd.f32 0.0, %v437
        %v439 = vpop.f32.mrf.mxu0
        %440 = vdwg.mxu0
        %441 = vmatpush.bf16.msra.mxu0 0
        %442 = vmatpush.bf16.msra.mxu0 0
        %443 = vmatpush.bf16.msra.mxu0 0
        %444 = vmatpush.bf16.msra.mxu0 0
        %445 = vmatpush.bf16.msra.mxu0 0
        %446 = vmatpush.bf16.msra.mxu0 0
        %447 = vmatpush.bf16.msra.mxu0 %v414
        %448 = vmatpush.bf16.msra.mxu0 %v410
        %449 = vmatmul.bf16.gmra.mxu0 %v426
        %v450 = vpop.f32.mrf.mxu0
        %v451 = vadd.f32 0.0, %v450
        %v452 = vpop.f32.mrf.mxu0
        %453 = vdwg.mxu0
        %454 = vmatpush.bf16.msra.mxu0 0
        %455 = vmatpush.bf16.msra.mxu0 0
        %456 = vmatpush.bf16.msra.mxu0 0
        %457 = vmatpush.bf16.msra.mxu0 0
        %458 = vmatpush.bf16.msra.mxu0 0
        %459 = vmatpush.bf16.msra.mxu0 0
        %460 = vmatpush.bf16.msra.mxu0 %v415
        %461 = vmatpush.bf16.msra.mxu0 %v411
        %462 = vmatmul.bf16.gmra.mxu0 %v426
        %v463 = vpop.f32.mrf.mxu0
        %v464 = vadd.f32 0.0, %v463
        %v465 = vpop.f32.mrf.mxu0
        %466 = vdwg.mxu0
        %467 = vmatpush.bf16.msra.mxu0 0
        %468 = vmatpush.bf16.msra.mxu0 0
        %469 = vmatpush.bf16.msra.mxu0 0
        %470 = vmatpush.bf16.msra.mxu0 0
        %471 = vmatpush.bf16.msra.mxu0 0
        %472 = vmatpush.bf16.msra.mxu0 0
        %473 = vmatpush.bf16.msra.mxu0 %v416
        %474 = vmatpush.bf16.msra.mxu0 %v412
        %475 = vmatmul.bf16.gmra.mxu0 %v426
        %v476 = vpop.f32.mrf.mxu0
        %v477 = vadd.f32 0.0, %v476
        %v478 = vpop.f32.mrf.mxu0
        %479 = vdwg.mxu0
        %v480 = vld [vmem:[#allocation8] sm:$0xff]
        %v481 = vld [vmem:[#allocation8 + $0x8] sm:$0xff]
        %v482 = vld [vmem:[#allocation8 + $0x10] sm:$0xff]
        %v483 = vld [vmem:[#allocation8 + $0x18] sm:$0xff]
        %v488 = vunpack.c.l.b16 %v480
        %v489 = vunpack.c.h.b16 %v480
        %v490 = vunpack.c.l.b16 %v481
        %v491 = vunpack.c.h.b16 %v481
        %v492 = vunpack.c.l.b16 %v482
        %v493 = vunpack.c.h.b16 %v482
        %v494 = vunpack.c.l.b16 %v483
        %v495 = vunpack.c.h.b16 %v483
        %v496 = vpack.c.b16 %v490, %v488
        %v497 = vpack.c.b16 %v491, %v489
        %v498 = vpack.c.b16 %v494, %v492
        %v499 = vpack.c.b16 %v495, %v493
        %v505 = vsel %vm335, %v376, 0
        %507 = vmatpush.bf16.msra.mxu0 0
        %508 = vmatpush.bf16.msra.mxu0 0
        %509 = vmatpush.bf16.msra.mxu0 0
        %510 = vmatpush.bf16.msra.mxu0 0
        %511 = vmatpush.bf16.msra.mxu0 0
        %512 = vmatpush.bf16.msra.mxu0 0
        %513 = vmatpush.bf16.msra.mxu0 %v498
        %514 = vmatpush.bf16.msra.mxu0 %v496
        %515 = vmatmul.bf16.gmra.mxu0 %v505
        %v516 = vpop.f32.mrf.mxu0
        %v517 = vadd.f32 0.0, %v516
        %v518 = vpop.f32.mrf.mxu0
        %519 = vdwg.mxu0
        %520 = vmatpush.bf16.msra.mxu0 0
        %521 = vmatpush.bf16.msra.mxu0 0
        %522 = vmatpush.bf16.msra.mxu0 0
        %523 = vmatpush.bf16.msra.mxu0 0
        %524 = vmatpush.bf16.msra.mxu0 0
        %525 = vmatpush.bf16.msra.mxu0 0
        %526 = vmatpush.bf16.msra.mxu0 %v499
        %527 = vmatpush.bf16.msra.mxu0 %v497
        %528 = vmatmul.bf16.gmra.mxu0 %v505
        %v529 = vpop.f32.mrf.mxu0
        %v530 = vadd.f32 0.0, %v529
        %v531 = vpop.f32.mrf.mxu0
        %532 = vdwg.mxu0
        %v537 = vrot.slane %v451, 6
        %v538 = vrot.slane %v464, 4
        %v539 = vrot.slane %v477, 2
        %vm540 = vcmask 1041408
        %v541 = vsel %vm540, %v438, %v537
        %vm542 = vcmask 1045508
        %v543 = vsel %vm542, %v538, %v539
        %vm544 = vcmask 1043456
        %v545 = vsel %vm544, %v541, %v543
        %vm546 = vcmask 1043458
        %v547 = vsel %vm546, %v438, %v537
        %vm548 = vcmask 1045504
        %v549 = vsel %vm548, %v539, %v538
        %vm550 = vcmask 1045506
        %v551 = vsel %vm550, %v547, %v549
        %v552 = vrot.slane %v551, 2
        %v553 = vsel %vm542, %v438, %v537
        %v554 = vsel %vm540, %v538, %v539
        %v555 = vsel %vm544, %v554, %v553
        %v556 = vrot.slane %v555, 4
        %v557 = vsel %vm548, %v537, %v438
        %v558 = vsel %vm546, %v538, %v539
        %v559 = vsel %vm550, %v558, %v557
        %v560 = vrot.slane %v559, 6
        %v566 = vunpack.c.l.s4 1966171168
        %v567 = vunpack.c.0.s8 %v566
        %v568 = vperm.slane %v545, %v567
        %v570 = vunpack.c.l.s4 1966171168
        %v571 = vunpack.c.0.s8 %v570
        %v572 = vperm.slane %v552, %v571
        %v574 = vunpack.c.l.s4 1966171168
        %v575 = vunpack.c.0.s8 %v574
        %v576 = vperm.slane %v556, %v575
        %v578 = vunpack.c.l.s4 1966171168
        %v579 = vunpack.c.0.s8 %v578
        %v580 = vperm.slane %v560, %v579
        %v581 = vpack.c.bf16 %v568, %v568
        %v582 = vpack.c.bf16 %v572, %v572
        %v583 = vpack.c.bf16 %v576, %v576
        %v584 = vpack.c.bf16 %v580, %v580
        %v585 = vpack.c.bf16 %v517, %v517
        %v586 = vpack.c.bf16 %v530, %v530
        %v591 = vunpack.c.l.b16 %v581
        %v592 = vunpack.c.l.b16 %v582
        %v593 = vunpack.c.l.b16 %v583
        %v594 = vunpack.c.l.b16 %v584
        %v595 = vpack.c.b16 %v592, %v591
        %v596 = vpack.c.b16 %v594, %v593
        %599 = vmatpush.bf16.xpose.msra.mxu0 0
        %600 = vmatpush.bf16.xpose.msra.mxu0 0
        %601 = vmatpush.bf16.xpose.msra.mxu0 0
        %602 = vmatpush.bf16.xpose.msra.mxu0 0
        %603 = vmatpush.bf16.xpose.msra.mxu0 0
        %604 = vmatpush.bf16.xpose.msra.mxu0 0
        %605 = vmatpush.bf16.xpose.msra.mxu0 0
        %606 = vmatpush.bf16.xpose.msra.mxu0 %v585
        %607 = vmatmul.bf16.gmra.mxu0 %v595
        %v608 = vpop.f32.mrf.mxu0
        %v609 = vadd.f32 0.0, %v608
        %v610 = vpop.f32.mrf.mxu0
        %v611 = vadd.f32 0.0, %v610
        %612 = vmatmul.bf16.gmra.mxu0 %v596
        %v613 = vpop.f32.mrf.mxu0
        %v614 = vadd.f32 0.0, %v613
        %v615 = vpop.f32.mrf.mxu0
        %v616 = vadd.f32 0.0, %v615
        %617 = vdwg.mxu0
        %vm618 = vcmask 64512
        %v619 = vsel %vm618, %v609, -inf
        %620 = vmax.xlane.f32.xlu0 %v619
        %v621 = vpop.xlane.xlu0 %620
        %v622 = vsel %vm618, %v611, -inf
        %623 = vmax.xlane.f32.xlu0 %v622
        %v624 = vpop.xlane.xlu0 %623
        %v625 = vsel %vm618, %v614, -inf
        %626 = vmax.xlane.f32.xlu0 %v625
        %v627 = vpop.xlane.xlu0 %626
        %v628 = vsel %vm618, %v616, -inf
        %629 = vmax.xlane.f32.xlu0 %v628
        %v630 = vpop.xlane.xlu0 %629
        %v631 = vsub.f32 %v609, %v621
        %v632 = vsub.f32 %v611, %v624
        %v633 = vsub.f32 %v614, %v627
        %v634 = vsub.f32 %v616, %v630
        %v635 = vmul.f32 %v631, 1.442695
        %v636 = vpow.pop %v635
        %v637 = vmul.f32 %v632, 1.442695
        %v638 = vpow.pop %v637
        %v639 = vmul.f32 %v633, 1.442695
        %v640 = vpow.pop %v639
        %v641 = vmul.f32 %v634, 1.442695
        %v642 = vpow.pop %v641
        %v643 = vsel %vm618, %v636, 0.0
        %644 = vadd.xlane.f32.xlu0 %v643
        %v645 = vpop.xlane.xlu0 %644
        %v646 = vsel %vm618, %v638, 0.0
        %647 = vadd.xlane.f32.xlu0 %v646
        %v648 = vpop.xlane.xlu0 %647
        %v649 = vsel %vm618, %v640, 0.0
        %650 = vadd.xlane.f32.xlu0 %v649
        %v651 = vpop.xlane.xlu0 %650
        %v652 = vsel %vm618, %v642, 0.0
        %653 = vadd.xlane.f32.xlu0 %v652
        %v654 = vpop.xlane.xlu0 %653
        %v655 = vrcp.pop %v645
        %v656 = vrcp.pop %v648
        %v657 = vrcp.pop %v651
        %v658 = vrcp.pop %v654
        %v659 = vmul.f32 %v636, %v655
        %v660 = vmul.f32 %v638, %v656
        %v661 = vmul.f32 %v640, %v657
        %v662 = vmul.f32 %v642, %v658
        %v663 = vpack.c.bf16 %v659, %v659
        %v664 = vpack.c.bf16 %v660, %v660
        %v665 = vpack.c.bf16 %v661, %v661
        %v666 = vpack.c.bf16 %v662, %v662
        %v671 = vunpack.c.l.b16 %v663
        %v672 = vunpack.c.l.b16 %v664
        %v673 = vunpack.c.l.b16 %v665
        %v674 = vunpack.c.l.b16 %v666
        %v675 = vpack.c.b16 %v672, %v671
        %v676 = vpack.c.b16 %v674, %v673
        %v678 = vsel %vm618, %v675, 0
        %v681 = vsel %vm618, %v676, 0
        %v684 = vsel %vm544, %v586, 0
        %686 = vmatpush.bf16.msra.mxu0 0
        %687 = vmatpush.bf16.msra.mxu0 0
        %688 = vmatpush.bf16.msra.mxu0 0
        %689 = vmatpush.bf16.msra.mxu0 0
        %690 = vmatpush.bf16.msra.mxu0 0
        %691 = vmatpush.bf16.msra.mxu0 0
        %692 = vmatpush.bf16.msra.mxu0 0
        %693 = vmatpush.bf16.msra.mxu0 %v684
        %694 = vmatmul.bf16.gmra.mxu0 %v678
        %v695 = vpop.f32.mrf.mxu0
        %v696 = vadd.f32 0.0, %v695
        %v697 = vpop.f32.mrf.mxu0
        %v698 = vadd.f32 0.0, %v697
        %699 = vmatmul.bf16.gmra.mxu0 %v681
        %v700 = vpop.f32.mrf.mxu0
        %v701 = vadd.f32 0.0, %v700
        %v702 = vpop.f32.mrf.mxu0
        %v703 = vadd.f32 0.0, %v702
        %704 = vdwg.mxu0
        %v706 = vunpack.c.l.s4 1935823168
        %v707 = vunpack.c.0.s8 %v706
        %v708 = vperm.slane %v696, %v707
        %v710 = vunpack.c.l.s4 1935823168
        %v711 = vunpack.c.0.s8 %v710
        %v712 = vperm.slane %v698, %v711
        %v714 = vunpack.c.l.s4 1935823168
        %v715 = vunpack.c.0.s8 %v714
        %v716 = vperm.slane %v701, %v715
        %v718 = vunpack.c.l.s4 1935823168
        %v719 = vunpack.c.0.s8 %v718
        %v720 = vperm.slane %v703, %v719
        %725 = vst [vmem:[#allocation1] ss:$4 sm:$0xff] %v708
        %s726 = scalar_lea.vmem [#allocation1], 1
        %727 = vst [vmem:[%s726] ss:$4 sm:$0xff] %v712
        %s728 = scalar_lea.vmem [#allocation1], 2
        %729 = vst [vmem:[%s728] ss:$4 sm:$0xff] %v716
        %s730 = scalar_lea.vmem [#allocation1], 3
        %731 = vst [vmem:[%s730] ss:$4 sm:$0xff] %v720
        %v732 = vld.sshfl [vmem:[#allocation1] sm:$0xff pattern:$0x73625140]
        %v733 = vld.sshfl [vmem:[#allocation1 + $0x8] sm:$0xff pattern:$0x73625140]
        %v734 = vld.sshfl [vmem:[#allocation1 + $0x10] sm:$0xff pattern:$0x73625140]
        %v735 = vld.sshfl [vmem:[#allocation1 + $0x18] sm:$0xff pattern:$0x73625140]
        %v740 = vpack.c.bf16 %v732, %v732
        %v741 = vpack.c.bf16 %v733, %v733
        %v742 = vpack.c.bf16 %v734, %v734
        %v743 = vpack.c.bf16 %v735, %v735
        %v744 = vld [vmem:[#allocation10] sm:$0xf]
        %v745 = vld [vmem:[#allocation10 + $0x4] sm:$0xf]
        %v746 = vld [vmem:[#allocation10 + $0x8] sm:$0xf]
        %v747 = vld [vmem:[#allocation10 + $0xc] sm:$0xf]
        %v748 = vld [vmem:[#allocation10 + $0x10] sm:$0xf]
        %v749 = vld [vmem:[#allocation10 + $0x14] sm:$0xf]
        %v750 = vld [vmem:[#allocation10 + $0x18] sm:$0xf]
        %v751 = vld [vmem:[#allocation10 + $0x1c] sm:$0xf]
        %v752 = vld [vmem:[#allocation10 + $0x20] sm:$0xf]
        %v753 = vld [vmem:[#allocation10 + $0x24] sm:$0xf]
        %v754 = vld [vmem:[#allocation10 + $0x28] sm:$0xf]
        %v755 = vld [vmem:[#allocation10 + $0x2c] sm:$0xf]
        %v756 = vld [vmem:[#allocation10 + $0x30] sm:$0xf]
        %v757 = vld [vmem:[#allocation10 + $0x34] sm:$0xf]
        %v758 = vld [vmem:[#allocation10 + $0x38] sm:$0xf]
        %v759 = vld [vmem:[#allocation10 + $0x3c] sm:$0xf]
        %v760 = vld [vmem:[#allocation10 + $0x40] sm:$0xf]
        %v761 = vld [vmem:[#allocation10 + $0x44] sm:$0xf]
        %v762 = vld [vmem:[#allocation10 + $0x48] sm:$0xf]
        %v763 = vld [vmem:[#allocation10 + $0x4c] sm:$0xf]
        %v764 = vld [vmem:[#allocation10 + $0x50] sm:$0xf]
        %v765 = vld [vmem:[#allocation10 + $0x54] sm:$0xf]
        %v766 = vld [vmem:[#allocation10 + $0x58] sm:$0xf]
        %v767 = vld [vmem:[#allocation10 + $0x5c] sm:$0xf]
        %v768 = vld [vmem:[#allocation10 + $0x60] sm:$0xf]
        %v769 = vld [vmem:[#allocation10 + $0x64] sm:$0xf]
        %v770 = vld [vmem:[#allocation10 + $0x68] sm:$0xf]
        %v771 = vld [vmem:[#allocation10 + $0x6c] sm:$0xf]
        %v772 = vld [vmem:[#allocation10 + $0x70] sm:$0xf]
        %v773 = vld [vmem:[#allocation10 + $0x74] sm:$0xf]
        %v774 = vld [vmem:[#allocation10 + $0x78] sm:$0xf]
        %v775 = vld [vmem:[#allocation10 + $0x7c] sm:$0xf]
        %v776 = vld [vmem:[#allocation10 + $0x80] sm:$0xf]
        %v777 = vld [vmem:[#allocation10 + $0x84] sm:$0xf]
        %v778 = vld [vmem:[#allocation10 + $0x88] sm:$0xf]
        %v779 = vld [vmem:[#allocation10 + $0x8c] sm:$0xf]
        %v780 = vld [vmem:[#allocation10 + $0x90] sm:$0xf]
        %v781 = vld [vmem:[#allocation10 + $0x94] sm:$0xf]
        %v782 = vld [vmem:[#allocation10 + $0x98] sm:$0xf]
        %v783 = vld [vmem:[#allocation10 + $0x9c] sm:$0xf]
        %v784 = vld [vmem:[#allocation10 + $0xa0] sm:$0xf]
        %v785 = vld [vmem:[#allocation10 + $0xa4] sm:$0xf]
        %v786 = vld [vmem:[#allocation10 + $0xa8] sm:$0xf]
        %v787 = vld [vmem:[#allocation10 + $0xac] sm:$0xf]
        %v788 = vld [vmem:[#allocation10 + $0xb0] sm:$0xf]
        %v789 = vld [vmem:[#allocation10 + $0xb4] sm:$0xf]
        %v790 = vld [vmem:[#allocation10 + $0xb8] sm:$0xf]
        %v791 = vld [vmem:[#allocation10 + $0xbc] sm:$0xf]
        %v792 = vld [vmem:[#allocation10 + $0xc0] sm:$0xf]
        %v793 = vld [vmem:[#allocation10 + $0xc4] sm:$0xf]
        %v794 = vld [vmem:[#allocation10 + $0xc8] sm:$0xf]
        %v795 = vld [vmem:[#allocation10 + $0xcc] sm:$0xf]
        %v796 = vld [vmem:[#allocation10 + $0xd0] sm:$0xf]
        %v797 = vld [vmem:[#allocation10 + $0xd4] sm:$0xf]
        %v798 = vld [vmem:[#allocation10 + $0xd8] sm:$0xf]
        %v799 = vld [vmem:[#allocation10 + $0xdc] sm:$0xf]
        %v800 = vld [vmem:[#allocation10 + $0xe0] sm:$0xf]
        %v801 = vld [vmem:[#allocation10 + $0xe4] sm:$0xf]
        %v802 = vld [vmem:[#allocation10 + $0xe8] sm:$0xf]
        %v803 = vld [vmem:[#allocation10 + $0xec] sm:$0xf]
        %v804 = vld [vmem:[#allocation10 + $0xf0] sm:$0xf]
        %v805 = vld [vmem:[#allocation10 + $0xf4] sm:$0xf]
        %v806 = vld [vmem:[#allocation10 + $0xf8] sm:$0xf]
        %v807 = vld [vmem:[#allocation10 + $0xfc] sm:$0xf]
        %v872 = vunpack.c.l.b16 %v744
        %v873 = vunpack.c.l.b16 %v745
        %v874 = vunpack.c.l.b16 %v746
        %v875 = vunpack.c.l.b16 %v747
        %v876 = vunpack.c.l.b16 %v748
        %v877 = vunpack.c.l.b16 %v749
        %v878 = vunpack.c.l.b16 %v750
        %v879 = vunpack.c.l.b16 %v751
        %v880 = vunpack.c.l.b16 %v752
        %v881 = vunpack.c.l.b16 %v753
        %v882 = vunpack.c.l.b16 %v754
        %v883 = vunpack.c.l.b16 %v755
        %v884 = vunpack.c.l.b16 %v756
        %v885 = vunpack.c.l.b16 %v757
        %v886 = vunpack.c.l.b16 %v758
        %v887 = vunpack.c.l.b16 %v759
        %v888 = vunpack.c.l.b16 %v760
        %v889 = vunpack.c.l.b16 %v761
        %v890 = vunpack.c.l.b16 %v762
        %v891 = vunpack.c.l.b16 %v763
        %v892 = vunpack.c.l.b16 %v764
        %v893 = vunpack.c.l.b16 %v765
        %v894 = vunpack.c.l.b16 %v766
        %v895 = vunpack.c.l.b16 %v767
        %v896 = vunpack.c.l.b16 %v768
        %v897 = vunpack.c.l.b16 %v769
        %v898 = vunpack.c.l.b16 %v770
        %v899 = vunpack.c.l.b16 %v771
        %v900 = vunpack.c.l.b16 %v772
        %v901 = vunpack.c.l.b16 %v773
        %v902 = vunpack.c.l.b16 %v774
        %v903 = vunpack.c.l.b16 %v775
        %v904 = vunpack.c.l.b16 %v776
        %v905 = vunpack.c.l.b16 %v777
        %v906 = vunpack.c.l.b16 %v778
        %v907 = vunpack.c.l.b16 %v779
        %v908 = vunpack.c.l.b16 %v780
        %v909 = vunpack.c.l.b16 %v781
        %v910 = vunpack.c.l.b16 %v782
        %v911 = vunpack.c.l.b16 %v783
        %v912 = vunpack.c.l.b16 %v784
        %v913 = vunpack.c.l.b16 %v785
        %v914 = vunpack.c.l.b16 %v786
        %v915 = vunpack.c.l.b16 %v787
        %v916 = vunpack.c.l.b16 %v788
        %v917 = vunpack.c.l.b16 %v789
        %v918 = vunpack.c.l.b16 %v790
        %v919 = vunpack.c.l.b16 %v791
        %v920 = vunpack.c.l.b16 %v792
        %v921 = vunpack.c.l.b16 %v793
        %v922 = vunpack.c.l.b16 %v794
        %v923 = vunpack.c.l.b16 %v795
        %v924 = vunpack.c.l.b16 %v796
        %v925 = vunpack.c.l.b16 %v797
        %v926 = vunpack.c.l.b16 %v798
        %v927 = vunpack.c.l.b16 %v799
        %v928 = vunpack.c.l.b16 %v800
        %v929 = vunpack.c.l.b16 %v801
        %v930 = vunpack.c.l.b16 %v802
        %v931 = vunpack.c.l.b16 %v803
        %v932 = vunpack.c.l.b16 %v804
        %v933 = vunpack.c.l.b16 %v805
        %v934 = vunpack.c.l.b16 %v806
        %v935 = vunpack.c.l.b16 %v807
        %v936 = vpack.c.b16 %v873, %v872
        %v937 = vpack.c.b16 %v875, %v874
        %v938 = vpack.c.b16 %v877, %v876
        %v939 = vpack.c.b16 %v879, %v878
        %v940 = vpack.c.b16 %v881, %v880
        %v941 = vpack.c.b16 %v883, %v882
        %v942 = vpack.c.b16 %v885, %v884
        %v943 = vpack.c.b16 %v887, %v886
        %v944 = vpack.c.b16 %v889, %v888
        %v945 = vpack.c.b16 %v891, %v890
        %v946 = vpack.c.b16 %v893, %v892
        %v947 = vpack.c.b16 %v895, %v894
        %v948 = vpack.c.b16 %v897, %v896
        %v949 = vpack.c.b16 %v899, %v898
        %v950 = vpack.c.b16 %v901, %v900
        %v951 = vpack.c.b16 %v903, %v902
        %v952 = vpack.c.b16 %v905, %v904
        %v953 = vpack.c.b16 %v907, %v906
        %v954 = vpack.c.b16 %v909, %v908
        %v955 = vpack.c.b16 %v911, %v910
        %v956 = vpack.c.b16 %v913, %v912
        %v957 = vpack.c.b16 %v915, %v914
        %v958 = vpack.c.b16 %v917, %v916
        %v959 = vpack.c.b16 %v919, %v918
        %v960 = vpack.c.b16 %v921, %v920
        %v961 = vpack.c.b16 %v923, %v922
        %v962 = vpack.c.b16 %v925, %v924
        %v963 = vpack.c.b16 %v927, %v926
        %v964 = vpack.c.b16 %v929, %v928
        %v965 = vpack.c.b16 %v931, %v930
        %v966 = vpack.c.b16 %v933, %v932
        %v967 = vpack.c.b16 %v935, %v934
        %1000 = vmatpush.bf16.msra.mxu0 %v943
        %1001 = vmatpush.bf16.msra.mxu0 %v942
        %1002 = vmatpush.bf16.msra.mxu0 %v941
        %1003 = vmatpush.bf16.msra.mxu0 %v940
        %1004 = vmatpush.bf16.msra.mxu0 %v939
        %1005 = vmatpush.bf16.msra.mxu0 %v938
        %1006 = vmatpush.bf16.msra.mxu0 %v937
        %1007 = vmatpush.bf16.msra.mxu0 %v936
        %1008 = vmatmul.bf16.gmra.mxu0 %v740
        %v1009 = vpop.f32.mrf.mxu0
        %v1010 = vadd.f32 0.0, %v1009
        %v1011 = vpop.f32.mrf.mxu0
        %1012 = vdwg.mxu0
        %1013 = vmatpush.bf16.msra.mxu0 %v951
        %1014 = vmatpush.bf16.msra.mxu0 %v950
        %1015 = vmatpush.bf16.msra.mxu0 %v949
        %1016 = vmatpush.bf16.msra.mxu0 %v948
        %1017 = vmatpush.bf16.msra.mxu0 %v947
        %1018 = vmatpush.bf16.msra.mxu0 %v946
        %1019 = vmatpush.bf16.msra.mxu0 %v945
        %1020 = vmatpush.bf16.msra.mxu0 %v944
        %1021 = vmatmul.bf16.gmra.mxu0 %v741
        %v1022 = vpop.f32.mrf.mxu0
        %v1023 = vadd.f32 %v1010, %v1022
        %v1024 = vpop.f32.mrf.mxu0
        %1025 = vdwg.mxu0
        %1026 = vmatpush.bf16.msra.mxu0 %v959
        %1027 = vmatpush.bf16.msra.mxu0 %v958
        %1028 = vmatpush.bf16.msra.mxu0 %v957
        %1029 = vmatpush.bf16.msra.mxu0 %v956
        %1030 = vmatpush.bf16.msra.mxu0 %v955
        %1031 = vmatpush.bf16.msra.mxu0 %v954
        %1032 = vmatpush.bf16.msra.mxu0 %v953
        %1033 = vmatpush.bf16.msra.mxu0 %v952
        %1034 = vmatmul.bf16.gmra.mxu0 %v742
        %v1035 = vpop.f32.mrf.mxu0
        %v1036 = vadd.f32 %v1023, %v1035
        %v1037 = vpop.f32.mrf.mxu0
        %1038 = vdwg.mxu0
        %1039 = vmatpush.bf16.msra.mxu0 %v967
        %1040 = vmatpush.bf16.msra.mxu0 %v966
        %1041 = vmatpush.bf16.msra.mxu0 %v965
        %1042 = vmatpush.bf16.msra.mxu0 %v964
        %1043 = vmatpush.bf16.msra.mxu0 %v963
        %1044 = vmatpush.bf16.msra.mxu0 %v962
        %1045 = vmatpush.bf16.msra.mxu0 %v961
        %1046 = vmatpush.bf16.msra.mxu0 %v960
        %1047 = vmatmul.bf16.gmra.mxu0 %v743
        %v1048 = vpop.f32.mrf.mxu0
        %v1049 = vadd.f32 %v1036, %v1048
        %v1050 = vpop.f32.mrf.mxu0
        %1051 = vdwg.mxu0
        %1052 = vst [vmem:[%s332] sm:$0xff] %v1049
        %s1053 = sand.u32 %s164, 1
        %s1054 = scalar_lea.sflag [#allocation4], %s1053
        %s1055 = sand.u32 %s164, 1
        %s1056 = smul.addr %s1055, 8
        %s1057 = scalar_lea.vmem [#allocation11], %s1056
        // Predicated region
        $region65: #{tpu_custom_call.1} parent=43 // pred_check
          %p1058 = pneg %p174
        $region66: #{tpu_custom_call.1} parent=43 // pred_check_branch
          %1060 = sbr.rel (%p1058) target = $region68
        $region67: #{tpu_custom_call.1} parent=43 // pred_region
          %1062 = vsyncadd %s1054, 0
          %s1063 = smul.addr %s25, 8
          %s1064 = scalar_lea.hbm %s6, %s1063
          %s1066 = sshll.u32 %s1057, 4
          %s1067 = int_to_ptr.vmem [resolvable:$true] %s1066
          %s1068 = sshll.u32 %s1064, 4
          %s1069 = int_to_ptr.hbm [resolvable:$true] %s1068
          %1071 = dma.vmem_to_hbm [thread:$0]  %s1067, 128, %s1069, %s1054
        $region68: #{tpu_custom_call.1} parent=43 // pred_fallthru
          _
      $region44: #{tpu_custom_call.1} parent=5 // pred_fallthru
        _
      %p1072 = scmp.le.s32.totalorder 2, %s20
      // Predicated region
      $region69: #{tpu_custom_call.1} parent=5 // pred_check
        %p1073 = pneg %p1072
      $region70: #{tpu_custom_call.1} parent=5 // pred_check_branch
        %1075 = sbr.rel (%p1073) target = $region72
      $region71: #{tpu_custom_call.1} parent=5 // pred_region
        %s1076 = ssub.s32 %s20, 2
        // Predicated region
        $region73: #{tpu_custom_call.1} parent=71 // pred_check
          %p1077 = pneg %p180
        $region74: #{tpu_custom_call.1} parent=71 // pred_check_branch
          %1079 = sbr.rel (%p1077) target = $region76
        $region75: #{tpu_custom_call.1} parent=71 // pred_region
          %s1080 = sand.u32 %s165, 1
          %s1081 = scalar_lea.sflag [#allocation4], %s1080
          %s1082 = sand.u32 %s165, 1
          %s1083 = smul.addr %s1082, 8
          %s1084 = scalar_lea.vmem [#allocation11], %s1083
          %1086 = dma.done %s1081, 128
        $region76: #{tpu_custom_call.1} parent=71 // pred_fallthru
          _
      $region72: #{tpu_custom_call.1} parent=5 // pred_fallthru
        _
    $region6: #{tpu_custom_call.1} parent=1 // loop_footer
      %s24 = sadd.s32 1, %s20
    $region7: #{tpu_custom_call.1} parent=1 // loop_footer_branch
      %19 = sbr.rel target = $region3
    $region8: #{tpu_custom_call.1} parent=1 // loop_exit
      _
    %1087 = vsyncpa [#allocation3], 1
    %s1088 = scalar_lea.sflag [#allocation3], 1
    %1089 = vsyncpa %s1088, 1
    %1090 = vsyncpa [#allocation6], 1
    %1091 = vsyncpa [#allocation9], 1
    %1092 = vsyncpa [#allocation4], 1
    %s1093 = scalar_lea.sflag [#allocation4], 1
    %1094 = vsyncpa %s1093, 1

</llo_original>
